<compile_context>
chip_gen: v7x
topology: tpu7x:2x2x1
jax: 0.10.0
libtpu: 0.0.40
codegen_flags: <defaults>
</compile_context>

<pallas_src>
import math

import jax
import jax.numpy as jnp
from jax.experimental import pallas as pl
from jax.experimental.pallas import tpu as pltpu

nInput = 1
nHidden = 10
nOutput = 1


def mlp_kernel(x_ref,
               w1_ref, b1_ref,
               w2_ref, b2_ref,
               w3_ref, b3_ref,
               w4_ref, b4_ref,
               o_ref):
    # x_ref: (nInput=1, TB)  -- batch on lanes.
    x = x_ref[...]

    # Layer 1: Linear(nInput=1, nHidden) + ReLU.
    # K=1 contraction -> VPU broadcast multiply, no MXU round-trip.
    # w1_ref: (nHidden, 1), b1_ref: (nHidden, 1)  ->  h: (nHidden, TB)
    h = jnp.maximum(w1_ref[...] * x + b1_ref[...], 0.0)

    # Layer 2: Linear(nHidden, nHidden) + ReLU  (MXU, f32 accumulate).
    h = jnp.maximum(
        jnp.dot(w2_ref[...], h, preferred_element_type=jnp.float32)
        + b2_ref[...], 0.0)

    # Layer 3: Linear(nHidden, nHidden) + ReLU  (MXU, f32 accumulate).
    h = jnp.maximum(
        jnp.dot(w3_ref[...], h, preferred_element_type=jnp.float32)
        + b3_ref[...], 0.0)

    # Layer 4: Linear(nHidden, nOutput=1), no activation.
    # N=1 output -> VPU multiply + sublane (XLU) reduction; result stays
    # lane-dense along the batch so the store is a full-width vst.
    # w4_ref: (nHidden, 1), b4_ref: (1, 1)  ->  o: (1, TB)
    o_ref[...] = (jnp.sum(w4_ref[...] * h, axis=0, keepdims=True)
                  + b4_ref[...]).astype(o_ref.dtype)


def mlp_forward(x, params, tb=1024):
    """x: [B, nInput] f32.

    params: list of 4 (W, b) pairs in PyTorch nn.Linear layout:
      W: [out_features, in_features], b: [out_features].
    Returns [B, nOutput] f32, identical to the torch module's forward.
    """
    B, n_in = x.shape
    assert n_in == nInput
    (w1, b1), (w2, b2), (w3, b3), (w4, b4) = params

    # Batch tile on the lane axis: force a multiple of 128 (lane width) and
    # don't over-pad tiny batches.  Bigger tiles amortize the ~0.35 us/step
    # pipeline overhead; VMEM per step stays tiny regardless.
    tb = max(128, (int(tb) // 128) * 128)
    tb = min(tb, pl.cdiv(B, 128) * 128)
    n_blocks = pl.cdiv(B, tb)
    Bp = n_blocks * tb

    # Transposed layout: (features, batch).  Pad batch up to a tile multiple;
    # padded lanes are computed independently and sliced off afterwards.
    xt = jnp.zeros((nInput, Bp), x.dtype).at[:, :B].set(x.T)

    kernel_args = (
        xt,
        w1, b1.reshape(nHidden, 1),
        w2, b2.reshape(nHidden, 1),
        w3, b3.reshape(nHidden, 1),
        w4.T, b4.reshape(nOutput, 1),  # layer-4 weight as [in, out] for VPU path
    )

    def const_spec(shape):
        # Weights/biases: one block, constant index_map -> DMA'd once, resident
        # in VMEM across all grid steps.
        return pl.BlockSpec(shape, lambda i: (0, 0))

    in_specs = [
        pl.BlockSpec((nInput, tb), lambda i: (0, i)),      # x tile (pipelined)
        const_spec((nHidden, nInput)), const_spec((nHidden, 1)),   # W1, b1
        const_spec((nHidden, nHidden)), const_spec((nHidden, 1)),  # W2, b2
        const_spec((nHidden, nHidden)), const_spec((nHidden, 1)),  # W3, b3
        const_spec((nHidden, nOutput)), const_spec((nOutput, 1)),  # W4.T, b4
    ]
    out_spec = pl.BlockSpec((nOutput, tb), lambda i: (0, i))

    flops = 2 * B * (nInput * nHidden + 2 * nHidden * nHidden + nHidden * nOutput)
    weight_bytes = sum(int(w.size + b.size) * 4 for (w, b) in params)
    cost = pl.CostEstimate(
        flops=flops,
        transcendentals=0,
        bytes_accessed=(B * nInput + B * nOutput) * 4 + weight_bytes,
    )

    out_t = pl.pallas_call(
        mlp_kernel,
        out_shape=jax.ShapeDtypeStruct((nOutput, Bp), jnp.float32),
        grid=(n_blocks,),
        in_specs=in_specs,
        out_specs=out_spec,
        compiler_params=pltpu.CompilerParams(
            dimension_semantics=("parallel",),  # megacore-shard batch on v7x
        ),
        cost_estimate=cost,
    )(*kernel_args)

    return out_t[:, :B].T  # back to (B, nOutput)


def init_linear(key, fan_in, fan_out):
    """Deterministic PyTorch-style nn.Linear init (uniform +/- 1/sqrt(fan_in)).
    Returns W as [out, in] (PyTorch layout) and b as [out]."""
    kw, kb = jax.random.split(key)
    bound = 1.0 / math.sqrt(fan_in)
    w = jax.random.uniform(kw, (fan_out, fan_in), jnp.float32, -bound, bound)
    b = jax.random.uniform(kb, (fan_out,), jnp.float32, -bound, bound)
    return w, b


if __name__ == "__main__":
    key = jax.random.PRNGKey(0)
    k_x, k1, k2, k3, k4 = jax.random.split(key, 5)

    params = [
        init_linear(k1, nInput, nHidden),
        init_linear(k2, nHidden, nHidden),
        init_linear(k3, nHidden, nHidden),
        init_linear(k4, nHidden, nOutput),
    ]

    B = 64
    x = jax.random.normal(k_x, (B, nInput), jnp.float32)

    out = mlp_forward(x, params)
    out = jax.block_until_ready(out)

    # Pure-JAX reference of the same math (PyTorch layout: y = x @ W.T + b).
    ref = x
    for i, (w, b) in enumerate(params):
        ref = ref @ w.T + b
        if i < len(params) - 1:
            ref = jnp.maximum(ref, 0.0)

    assert out.shape == (B, nOutput)
    assert jnp.allclose(out, ref, atol=1e-5, rtol=1e-5)

    print("KERNEL_OK")
</pallas_src>

<mosaic_0001>
module attributes {stable_mosaic.version = 11 : i64} {
  func.func @mlp_kernel(%arg0: i32, %arg1: memref<1x128xf32, #tpu.memory_space<vmem>>, %arg2: memref<10x1xf32, #tpu.memory_space<vmem>>, %arg3: memref<10x1xf32, #tpu.memory_space<vmem>>, %arg4: memref<10x10xf32, #tpu.memory_space<vmem>>, %arg5: memref<10x1xf32, #tpu.memory_space<vmem>>, %arg6: memref<10x10xf32, #tpu.memory_space<vmem>>, %arg7: memref<10x1xf32, #tpu.memory_space<vmem>>, %arg8: memref<10x1xf32, #tpu.memory_space<vmem>>, %arg9: memref<1x1xf32, #tpu.memory_space<vmem>>, %arg10: memref<1x128xf32, #tpu.memory_space<vmem>>) attributes {dimension_semantics = [#tpu.dimension_semantics<parallel>], iteration_bounds = array<i64: 1>, scalar_prefetch = 0 : i64, scratch_operands = 0 : i64, tpu.core_type = #tpu.core_type<tc>, window_params = [{transform_indices = @transform_0, window_bounds = array<i64: 1, 128>}, {pipeline_mode = #tpu.pipeline_mode<synchronous>, transform_indices = @transform_1, window_bounds = array<i64: 10, 1>}, {pipeline_mode = #tpu.pipeline_mode<synchronous>, transform_indices = @transform_2, window_bounds = array<i64: 10, 1>}, {pipeline_mode = #tpu.pipeline_mode<synchronous>, transform_indices = @transform_3, window_bounds = array<i64: 10, 10>}, {pipeline_mode = #tpu.pipeline_mode<synchronous>, transform_indices = @transform_4, window_bounds = array<i64: 10, 1>}, {pipeline_mode = #tpu.pipeline_mode<synchronous>, transform_indices = @transform_5, window_bounds = array<i64: 10, 10>}, {pipeline_mode = #tpu.pipeline_mode<synchronous>, transform_indices = @transform_6, window_bounds = array<i64: 10, 1>}, {pipeline_mode = #tpu.pipeline_mode<synchronous>, transform_indices = @transform_7, window_bounds = array<i64: 10, 1>}, {pipeline_mode = #tpu.pipeline_mode<synchronous>, transform_indices = @transform_8, window_bounds = array<i64: 1, 1>}, {transform_indices = @transform_9, window_bounds = array<i64: 1, 128>}]} {
    %c0 = arith.constant 0 : index
    %c0_0 = arith.constant 0 : index
    %0 = vector.load %arg1[%c0, %c0_0] : memref<1x128xf32, #tpu.memory_space<vmem>>, vector<1x128xf32>
    %c0_1 = arith.constant 0 : index
    %c0_2 = arith.constant 0 : index
    %1 = vector.load %arg2[%c0_1, %c0_2] : memref<10x1xf32, #tpu.memory_space<vmem>>, vector<10x1xf32>
    %2 = vector.broadcast %1 : vector<10x1xf32> to vector<10x128xf32>
    %3 = vector.broadcast %0 : vector<1x128xf32> to vector<10x128xf32>
    %4 = arith.mulf %2, %3 : vector<10x128xf32>
    %c0_3 = arith.constant 0 : index
    %c0_4 = arith.constant 0 : index
    %5 = vector.load %arg3[%c0_3, %c0_4] : memref<10x1xf32, #tpu.memory_space<vmem>>, vector<10x1xf32>
    %6 = vector.broadcast %5 : vector<10x1xf32> to vector<10x128xf32>
    %7 = arith.addf %4, %6 : vector<10x128xf32>
    %cst = arith.constant 0.000000e+00 : f32
    %8 = vector.broadcast %cst : f32 to vector<10x128xf32>
    %9 = arith.maximumf %7, %8 : vector<10x128xf32>
    %c0_5 = arith.constant 0 : index
    %c0_6 = arith.constant 0 : index
    %10 = vector.load %arg4[%c0_5, %c0_6] : memref<10x10xf32, #tpu.memory_space<vmem>>, vector<10x10xf32>
    %cst_7 = arith.constant dense<0.000000e+00> : vector<10x128xf32>
    %11 = tpu.matmul %10, %9, %cst_7 {dimension_numbers = #tpu.dot_dimension_numbers<[1], [0], [0], [1], [0, 0, 1, 1], [], []>} : vector<10x10xf32>, vector<10x128xf32>, vector<10x128xf32> -> vector<10x128xf32>
    %c0_8 = arith.constant 0 : index
    %c0_9 = arith.constant 0 : index
    %12 = vector.load %arg5[%c0_8, %c0_9] : memref<10x1xf32, #tpu.memory_space<vmem>>, vector<10x1xf32>
    %13 = vector.broadcast %12 : vector<10x1xf32> to vector<10x128xf32>
    %14 = arith.addf %11, %13 : vector<10x128xf32>
    %cst_10 = arith.constant 0.000000e+00 : f32
    %15 = vector.broadcast %cst_10 : f32 to vector<10x128xf32>
    %16 = arith.maximumf %14, %15 : vector<10x128xf32>
    %c0_11 = arith.constant 0 : index
    %c0_12 = arith.constant 0 : index
    %17 = vector.load %arg6[%c0_11, %c0_12] : memref<10x10xf32, #tpu.memory_space<vmem>>, vector<10x10xf32>
    %cst_13 = arith.constant dense<0.000000e+00> : vector<10x128xf32>
    %18 = tpu.matmul %17, %16, %cst_13 {dimension_numbers = #tpu.dot_dimension_numbers<[1], [0], [0], [1], [0, 0, 1, 1], [], []>} : vector<10x10xf32>, vector<10x128xf32>, vector<10x128xf32> -> vector<10x128xf32>
    %c0_14 = arith.constant 0 : index
    %c0_15 = arith.constant 0 : index
    %19 = vector.load %arg7[%c0_14, %c0_15] : memref<10x1xf32, #tpu.memory_space<vmem>>, vector<10x1xf32>
    %20 = vector.broadcast %19 : vector<10x1xf32> to vector<10x128xf32>
    %21 = arith.addf %18, %20 : vector<10x128xf32>
    %cst_16 = arith.constant 0.000000e+00 : f32
    %22 = vector.broadcast %cst_16 : f32 to vector<10x128xf32>
    %23 = arith.maximumf %21, %22 : vector<10x128xf32>
    %c0_17 = arith.constant 0 : index
    %c0_18 = arith.constant 0 : index
    %24 = vector.load %arg8[%c0_17, %c0_18] : memref<10x1xf32, #tpu.memory_space<vmem>>, vector<10x1xf32>
    %25 = vector.broadcast %24 : vector<10x1xf32> to vector<10x128xf32>
    %26 = arith.mulf %25, %23 : vector<10x128xf32>
    %cst_19 = arith.constant dense<0.000000e+00> : vector<128xf32>
    %27 = vector.multi_reduction <add>, %26, %cst_19 [0] : vector<10x128xf32> to vector<128xf32>
    %28 = vector.shape_cast %27 : vector<128xf32> to vector<1x128xf32>
    %c0_20 = arith.constant 0 : index
    %c0_21 = arith.constant 0 : index
    %29 = vector.load %arg9[%c0_20, %c0_21] : memref<1x1xf32, #tpu.memory_space<vmem>>, vector<1x1xf32>
    %30 = vector.broadcast %29 : vector<1x1xf32> to vector<1x128xf32>
    %31 = arith.addf %28, %30 : vector<1x128xf32>
    %c0_22 = arith.constant 0 : index
    %c0_23 = arith.constant 0 : index
    %32 = vector.load %arg10[%c0_22, %c0_23] : memref<1x128xf32, #tpu.memory_space<vmem>>, vector<1x128xf32>
    tpu.vector_store %arg10[%c0_22, %c0_23], %31 {strides = array<i32>} : memref<1x128xf32, #tpu.memory_space<vmem>>, vector<1x128xf32>,
    return
  }
  func.func @transform_0(%arg0: i32) -> (i32, i32) {
    %c0_i32 = arith.constant 0 : i32
    %c0_i32_0 = arith.constant 0 : i32
    return %c0_i32, %arg0 : i32, i32
  }
  func.func @transform_1(%arg0: i32) -> (i32, i32) {
    %c0_i32 = arith.constant 0 : i32
    %c0_i32_0 = arith.constant 0 : i32
    %c0_i32_1 = arith.constant 0 : i32
    return %c0_i32, %c0_i32_0 : i32, i32
  }
  func.func @transform_2(%arg0: i32) -> (i32, i32) {
    %c0_i32 = arith.constant 0 : i32
    %c0_i32_0 = arith.constant 0 : i32
    %c0_i32_1 = arith.constant 0 : i32
    return %c0_i32, %c0_i32_0 : i32, i32
  }
  func.func @transform_3(%arg0: i32) -> (i32, i32) {
    %c0_i32 = arith.constant 0 : i32
    %c0_i32_0 = arith.constant 0 : i32
    %c0_i32_1 = arith.constant 0 : i32
    return %c0_i32, %c0_i32_0 : i32, i32
  }
  func.func @transform_4(%arg0: i32) -> (i32, i32) {
    %c0_i32 = arith.constant 0 : i32
    %c0_i32_0 = arith.constant 0 : i32
    %c0_i32_1 = arith.constant 0 : i32
    return %c0_i32, %c0_i32_0 : i32, i32
  }
  func.func @transform_5(%arg0: i32) -> (i32, i32) {
    %c0_i32 = arith.constant 0 : i32
    %c0_i32_0 = arith.constant 0 : i32
    %c0_i32_1 = arith.constant 0 : i32
    return %c0_i32, %c0_i32_0 : i32, i32
  }
  func.func @transform_6(%arg0: i32) -> (i32, i32) {
    %c0_i32 = arith.constant 0 : i32
    %c0_i32_0 = arith.constant 0 : i32
    %c0_i32_1 = arith.constant 0 : i32
    return %c0_i32, %c0_i32_0 : i32, i32
  }
  func.func @transform_7(%arg0: i32) -> (i32, i32) {
    %c0_i32 = arith.constant 0 : i32
    %c0_i32_0 = arith.constant 0 : i32
    %c0_i32_1 = arith.constant 0 : i32
    return %c0_i32, %c0_i32_0 : i32, i32
  }
  func.func @transform_8(%arg0: i32) -> (i32, i32) {
    %c0_i32 = arith.constant 0 : i32
    %c0_i32_0 = arith.constant 0 : i32
    %c0_i32_1 = arith.constant 0 : i32
    return %c0_i32, %c0_i32_0 : i32, i32
  }
  func.func @transform_9(%arg0: i32) -> (i32, i32) {
    %c0_i32 = arith.constant 0 : i32
    %c0_i32_0 = arith.constant 0 : i32
    return %c0_i32, %arg0 : i32, i32
  }
}

</mosaic_0001>

<llo_original>
// kernel: tpu_custom_call.1
$region0: #{tpu_custom_call.1}
  #allocation0 [shape = 'u32[]', space=smem, size = 0x4, offset = 0x4, fixed_abs, tag = 'smem constant byte address 0x4 - core index']
  #allocation1 [shape = 'u32[144,128]{1,0:T(1,128)}', space=vmem, size = 0x12000, scoped, tag = 'internal scratch']
  #allocation2 [shape = 'f32[1,1]{1,0:T(1,128)S(1)}', space=vmem, size = 0x200, scoped, tag = 'scoped memory for tpu_custom_call.1']
  %s0 = inlined_call_operand.vmem [shape: f32[1,128], index: 0, kind: input, shape index: {}]
  %s1 = inlined_call_operand.vmem [shape: f32[10,1], index: 1, kind: input, shape index: {}]
  %s2 = inlined_call_operand.vmem [shape: f32[10,1], index: 2, kind: input, shape index: {}]
  %s3 = inlined_call_operand.vmem [shape: f32[10,10], index: 3, kind: input, shape index: {}]
  %s4 = inlined_call_operand.vmem [shape: f32[10,1], index: 4, kind: input, shape index: {}]
  %s5 = inlined_call_operand.vmem [shape: f32[10,10], index: 5, kind: input, shape index: {}]
  %s6 = inlined_call_operand.vmem [shape: f32[10,1], index: 6, kind: input, shape index: {}]
  %s7 = inlined_call_operand.vmem [shape: f32[10,1], index: 7, kind: input, shape index: {}]
  %s8 = inlined_call_operand.<no memory space> [shape: f32[1,1], index: 8, kind: input, shape index: {}]
  %s9 = inlined_call_operand.hbm [shape: f32[1,128], index: 9, kind: output, shape index: {}]
  %s10 = sld [smem:[#allocation0]]
  $region46: #{tpu_custom_call.1} parent=0
    _
  %s12 = ssub.s32 1, %s10
  %s13 = scalar_select 0, %s12, %s10
  %v14 = vstv %s8
  %15 = vst [vmem:[#allocation2] sm:$0x1] %v14
  $region1: #{tpu_custom_call.1} parent=0
    #allocation3 [shape = 'u8[512]{0}', space=vmem, size = 0x400, scoped, tag = 'output window, operand 0, single buffered']
    #allocation4 [shape = 's32[1]{0}', space=sflag, size = 0x4, scoped, tag = 'scoped memory for tpu_custom_call.1']
    %16 = vsyncpa [#allocation4], 0
    // Predicated region
    $region2: #{tpu_custom_call.1} parent=1 // pred_check
      _
    $region3: #{tpu_custom_call.1} parent=1 // pred_check_branch
      %18 = sbr.rel (0) target = $region5
    $region4: #{tpu_custom_call.1} parent=1 // pred_region
      _
    $region5: #{tpu_custom_call.1} parent=1 // pred_fallthru
      _
    // Predicated region
    $region6: #{tpu_custom_call.1} parent=1 // pred_check
      _
    $region7: #{tpu_custom_call.1} parent=1 // pred_check_branch
      %20 = sbr.rel (0) target = $region9
    $region8: #{tpu_custom_call.1} parent=1 // pred_region
      _
    $region9: #{tpu_custom_call.1} parent=1 // pred_fallthru
      _
    // Predicated region
    $region10: #{tpu_custom_call.1} parent=1 // pred_check
      _
    $region11: #{tpu_custom_call.1} parent=1 // pred_check_branch
      %22 = sbr.rel (0) target = $region13
    $region12: #{tpu_custom_call.1} parent=1 // pred_region
      _
    $region13: #{tpu_custom_call.1} parent=1 // pred_fallthru
      _
    // Predicated region
    $region14: #{tpu_custom_call.1} parent=1 // pred_check
      _
    $region15: #{tpu_custom_call.1} parent=1 // pred_check_branch
      %24 = sbr.rel (0) target = $region17
    $region16: #{tpu_custom_call.1} parent=1 // pred_region
      _
    $region17: #{tpu_custom_call.1} parent=1 // pred_fallthru
      _
    // Predicated region
    $region18: #{tpu_custom_call.1} parent=1 // pred_check
      _
    $region19: #{tpu_custom_call.1} parent=1 // pred_check_branch
      %26 = sbr.rel (0) target = $region21
    $region20: #{tpu_custom_call.1} parent=1 // pred_region
      _
    $region21: #{tpu_custom_call.1} parent=1 // pred_fallthru
      _
    // Predicated region
    $region22: #{tpu_custom_call.1} parent=1 // pred_check
      _
    $region23: #{tpu_custom_call.1} parent=1 // pred_check_branch
      %28 = sbr.rel (0) target = $region25
    $region24: #{tpu_custom_call.1} parent=1 // pred_region
      _
    $region25: #{tpu_custom_call.1} parent=1 // pred_fallthru
      _
    // Predicated region
    $region26: #{tpu_custom_call.1} parent=1 // pred_check
      _
    $region27: #{tpu_custom_call.1} parent=1 // pred_check_branch
      %30 = sbr.rel (0) target = $region29
    $region28: #{tpu_custom_call.1} parent=1 // pred_region
      _
    $region29: #{tpu_custom_call.1} parent=1 // pred_fallthru
      _
    // Predicated region
    $region30: #{tpu_custom_call.1} parent=1 // pred_check
      _
    $region31: #{tpu_custom_call.1} parent=1 // pred_check_branch
      %32 = sbr.rel (0) target = $region33
    $region32: #{tpu_custom_call.1} parent=1 // pred_region
      _
    $region33: #{tpu_custom_call.1} parent=1 // pred_fallthru
      _
    // Predicated region
    $region34: #{tpu_custom_call.1} parent=1 // pred_check
      _
    $region35: #{tpu_custom_call.1} parent=1 // pred_check_branch
      %34 = sbr.rel (0) target = $region37
    $region36: #{tpu_custom_call.1} parent=1 // pred_region
      _
    $region37: #{tpu_custom_call.1} parent=1 // pred_fallthru
      _
    %v35 = vld [vmem:[%s0] sm:$0x1]
    %v36 = vld [vmem:[%s1] sm:$0xff]
    %v37 = vld [vmem:[%s1 + $0x8] sm:$0x3]
    %39 = vset.pattern.permute.xlu0 0
    %40 = vperm.xlu0 %39, %v36
    %v41 = vpop.permute.xlu0 %40
    %44 = vset.pattern.permute.xlu0 0
    %45 = vperm.xlu0 %44, %v37
    %v46 = vpop.permute.xlu0 %45
    %v49 = vlaneseq
    %v50 = vshrl.u32 %v49, 7
    %v51 = vsub.s32 0, %v50
    %v52 = vrot.slane %v35, %v51
    %v54 = vmul.f32 %v41, %v52
    %v55 = vmul.f32 %v46, %v52
    %v56 = vld [vmem:[%s2] sm:$0xff]
    %v57 = vld [vmem:[%s2 + $0x8] sm:$0x3]
    %59 = vset.pattern.permute.xlu0 0
    %60 = vperm.xlu0 %59, %v56
    %v61 = vpop.permute.xlu0 %60
    %64 = vset.pattern.permute.xlu0 0
    %65 = vperm.xlu0 %64, %v57
    %v66 = vpop.permute.xlu0 %65
    %v68 = vadd.f32 %v54, %v61
    %v69 = vadd.f32 %v55, %v66
    %v70 = vmax.f32 %v68, 0.0
    %v71 = vmax.f32 %v69, 0.0
    %v72 = vld [vmem:[%s3] sm:$0xff]
    %v73 = vld [vmem:[%s3 + $0x8] sm:$0x3]
    %v74 = vld [vmem:[%s4] sm:$0xff]
    %v75 = vld [vmem:[%s4 + $0x8] sm:$0x3]
    %77 = vset.pattern.permute.xlu0 0
    %78 = vperm.xlu0 %77, %v74
    %v79 = vpop.permute.xlu0 %78
    %82 = vset.pattern.permute.xlu0 0
    %83 = vperm.xlu0 %82, %v75
    %v84 = vpop.permute.xlu0 %83
    %vm86 = vcmask 80896
    %v88 = vsel %vm86, %v72, 0
    %v91 = vsel %vm86, %v73, 0
    %vm93 = vcmask 1041408
    %v95 = vsel %vm93, %v71, 0
    %97 = vmatprep.subr.mxu0 0.0
    %98 = vmatpush1.msra.mxu0 %v70
    %99 = vmatprep.subr.mxu0 0.0
    %100 = vmatpush1.msra.mxu0 %v95
    %101 = vmatprep.subr.mxu0 0.0
    %102 = vmatpush1.msra.mxu0 0.0
    %103 = vmatprep.subr.mxu0 0.0
    %104 = vmatpush1.msra.mxu0 0.0
    %105 = vmatprep.subr.mxu0 0.0
    %106 = vmatpush1.msra.mxu0 0.0
    %107 = vmatprep.subr.mxu0 0.0
    %108 = vmatpush1.msra.mxu0 0.0
    %109 = vmatprep.subr.mxu0 0.0
    %110 = vmatpush1.msra.mxu0 0.0
    %111 = vmatprep.subr.mxu0 0.0
    %112 = vmatpush1.msra.mxu0 0.0
    %113 = vmatprep.subr.mxu0 0.0
    %114 = vmatpush1.msra.mxu0 0.0
    %115 = vmatprep.subr.mxu0 0.0
    %116 = vmatpush1.msra.mxu0 0.0
    %117 = vmatprep.subr.mxu0 0.0
    %118 = vmatpush1.msra.mxu0 0.0
    %119 = vmatprep.subr.mxu0 0.0
    %120 = vmatpush1.msra.mxu0 0.0
    %121 = vmatprep.subr.mxu0 0.0
    %122 = vmatpush1.msra.mxu0 0.0
    %123 = vmatprep.subr.mxu0 0.0
    %124 = vmatpush1.msra.mxu0 0.0
    %125 = vmatprep.subr.mxu0 0.0
    %126 = vmatpush1.msra.mxu0 0.0
    %127 = vmatprep.subr.mxu0 0.0
    %128 = vmatpush1.msra.mxu0 0.0
    %129 = vmatprep.subr.mxu0 0.0
    %130 = vmatpush1.msra.mxu0 0.0
    %131 = vmatprep.subr.mxu0 0.0
    %132 = vmatpush1.msra.mxu0 0.0
    %133 = vmatprep.subr.mxu0 0.0
    %134 = vmatpush1.msra.mxu0 0.0
    %135 = vmatprep.subr.mxu0 0.0
    %136 = vmatpush1.msra.mxu0 0.0
    %137 = vmatprep.subr.mxu0 0.0
    %138 = vmatpush1.msra.mxu0 0.0
    %139 = vmatprep.subr.mxu0 0.0
    %140 = vmatpush1.msra.mxu0 0.0
    %141 = vmatprep.subr.mxu0 0.0
    %142 = vmatpush1.msra.mxu0 0.0
    %143 = vmatprep.subr.mxu0 0.0
    %144 = vmatpush1.msra.mxu0 0.0
    %145 = vmatprep.subr.mxu0 0.0
    %146 = vmatpush1.msra.mxu0 0.0
    %147 = vmatprep.subr.mxu0 0.0
    %148 = vmatpush1.msra.mxu0 0.0
    %149 = vmatprep.subr.mxu0 0.0
    %150 = vmatpush1.msra.mxu0 0.0
    %151 = vmatprep.subr.mxu0 0.0
    %152 = vmatpush1.msra.mxu0 0.0
    %153 = vmatprep.subr.mxu0 0.0
    %154 = vmatpush1.msra.mxu0 0.0
    %155 = vmatprep.subr.mxu0 0.0
    %156 = vmatpush1.msra.mxu0 0.0
    %157 = vmatprep.subr.mxu0 0.0
    %158 = vmatpush1.msra.mxu0 0.0
    %159 = vmatprep.subr.mxu0 0.0
    %160 = vmatpush1.msra.mxu0 0.0
    %161 = vmatprep.mubr.f32.mxu0 0.0
    %162 = vmatmul.mubr.f32.gmra.mrb[0].mxu0 %v88
    %v163 = vpop.f32.mrb[0].mxu0
    %v164 = vadd.f32 %v79, %v163
    %v165 = vpop.f32.mrb[0].mxu0
    %166 = vmatprep.mubr.f32.mxu0 0.0
    %167 = vmatmul.mubr.f32.gmra.mrb[0].mxu0 %v91
    %v168 = vpop.f32.mrb[0].mxu0
    %v169 = vadd.f32 %v84, %v168
    %v170 = vpop.f32.mrb[0].mxu0
    %171 = vdwg.mxu0
    %v172 = vmax.f32 %v164, 0.0
    %v173 = vmax.f32 %v169, 0.0
    %v174 = vld [vmem:[%s5] sm:$0xff]
    %v175 = vld [vmem:[%s5 + $0x8] sm:$0x3]
    %v176 = vld [vmem:[%s6] sm:$0xff]
    %v177 = vld [vmem:[%s6 + $0x8] sm:$0x3]
    %179 = vset.pattern.permute.xlu0 0
    %180 = vperm.xlu0 %179, %v176
    %v181 = vpop.permute.xlu0 %180
    %184 = vset.pattern.permute.xlu0 0
    %185 = vperm.xlu0 %184, %v177
    %v186 = vpop.permute.xlu0 %185
    %v189 = vsel %vm86, %v174, 0
    %v192 = vsel %vm86, %v175, 0
    %v195 = vsel %vm93, %v173, 0
    %197 = vmatprep.subr.mxu0 0.0
    %198 = vmatpush1.msra.mxu0 %v172
    %199 = vmatprep.subr.mxu0 0.0
    %200 = vmatpush1.msra.mxu0 %v195
    %201 = vmatprep.subr.mxu0 0.0
    %202 = vmatpush1.msra.mxu0 0.0
    %203 = vmatprep.subr.mxu0 0.0
    %204 = vmatpush1.msra.mxu0 0.0
    %205 = vmatprep.subr.mxu0 0.0
    %206 = vmatpush1.msra.mxu0 0.0
    %207 = vmatprep.subr.mxu0 0.0
    %208 = vmatpush1.msra.mxu0 0.0
    %209 = vmatprep.subr.mxu0 0.0
    %210 = vmatpush1.msra.mxu0 0.0
    %211 = vmatprep.subr.mxu0 0.0
    %212 = vmatpush1.msra.mxu0 0.0
    %213 = vmatprep.subr.mxu0 0.0
    %214 = vmatpush1.msra.mxu0 0.0
    %215 = vmatprep.subr.mxu0 0.0
    %216 = vmatpush1.msra.mxu0 0.0
    %217 = vmatprep.subr.mxu0 0.0
    %218 = vmatpush1.msra.mxu0 0.0
    %219 = vmatprep.subr.mxu0 0.0
    %220 = vmatpush1.msra.mxu0 0.0
    %221 = vmatprep.subr.mxu0 0.0
    %222 = vmatpush1.msra.mxu0 0.0
    %223 = vmatprep.subr.mxu0 0.0
    %224 = vmatpush1.msra.mxu0 0.0
    %225 = vmatprep.subr.mxu0 0.0
    %226 = vmatpush1.msra.mxu0 0.0
    %227 = vmatprep.subr.mxu0 0.0
    %228 = vmatpush1.msra.mxu0 0.0
    %229 = vmatprep.subr.mxu0 0.0
    %230 = vmatpush1.msra.mxu0 0.0
    %231 = vmatprep.subr.mxu0 0.0
    %232 = vmatpush1.msra.mxu0 0.0
    %233 = vmatprep.subr.mxu0 0.0
    %234 = vmatpush1.msra.mxu0 0.0
    %235 = vmatprep.subr.mxu0 0.0
    %236 = vmatpush1.msra.mxu0 0.0
    %237 = vmatprep.subr.mxu0 0.0
    %238 = vmatpush1.msra.mxu0 0.0
    %239 = vmatprep.subr.mxu0 0.0
    %240 = vmatpush1.msra.mxu0 0.0
    %241 = vmatprep.subr.mxu0 0.0
    %242 = vmatpush1.msra.mxu0 0.0
    %243 = vmatprep.subr.mxu0 0.0
    %244 = vmatpush1.msra.mxu0 0.0
    %245 = vmatprep.subr.mxu0 0.0
    %246 = vmatpush1.msra.mxu0 0.0
    %247 = vmatprep.subr.mxu0 0.0
    %248 = vmatpush1.msra.mxu0 0.0
    %249 = vmatprep.subr.mxu0 0.0
    %250 = vmatpush1.msra.mxu0 0.0
    %251 = vmatprep.subr.mxu0 0.0
    %252 = vmatpush1.msra.mxu0 0.0
    %253 = vmatprep.subr.mxu0 0.0
    %254 = vmatpush1.msra.mxu0 0.0
    %255 = vmatprep.subr.mxu0 0.0
    %256 = vmatpush1.msra.mxu0 0.0
    %257 = vmatprep.subr.mxu0 0.0
    %258 = vmatpush1.msra.mxu0 0.0
    %259 = vmatprep.subr.mxu0 0.0
    %260 = vmatpush1.msra.mxu0 0.0
    %261 = vmatprep.mubr.f32.mxu0 0.0
    %262 = vmatmul.mubr.f32.gmra.mrb[0].mxu0 %v189
    %v263 = vpop.f32.mrb[0].mxu0
    %v264 = vadd.f32 %v181, %v263
    %v265 = vpop.f32.mrb[0].mxu0
    %266 = vmatprep.mubr.f32.mxu0 0.0
    %267 = vmatmul.mubr.f32.gmra.mrb[0].mxu0 %v192
    %v268 = vpop.f32.mrb[0].mxu0
    %v269 = vadd.f32 %v186, %v268
    %v270 = vpop.f32.mrb[0].mxu0
    %271 = vdwg.mxu0
    %v272 = vmax.f32 %v264, 0.0
    %v273 = vmax.f32 %v269, 0.0
    %v274 = vld [vmem:[%s7] sm:$0xff]
    %v275 = vld [vmem:[%s7 + $0x8] sm:$0x3]
    %277 = vset.pattern.permute.xlu0 0
    %278 = vperm.xlu0 %277, %v274
    %v279 = vpop.permute.xlu0 %278
    %282 = vset.pattern.permute.xlu0 0
    %283 = vperm.xlu0 %282, %v275
    %v284 = vpop.permute.xlu0 %283
    %v286 = vmul.f32 %v279, %v272
    %v287 = vmul.f32 %v284, %v273
    %v288 = vsel %vm93, %v287, 0.0
    %v289 = vadd.f32 %v286, %v288
    %v290 = vrot.slane %v289, 4
    %v291 = vadd.f32 %v289, %v290
    %v292 = vrot.slane %v291, 2
    %v293 = vadd.f32 %v291, %v292
    %v294 = vrot.slane %v293, 1
    %v295 = vadd.f32 %v293, %v294
    %v296 = vld [vmem:[#allocation2] sm:$0x1]
    %298 = vset.pattern.permute.xlu0 0
    %299 = vperm.xlu0 %298, %v296
    %v300 = vpop.permute.xlu0 %299
    %v302 = vlaneseq
    %v303 = vshrl.u32 %v302, 7
    %v304 = vsub.s32 0, %v303
    %v305 = vrot.slane %v300, %v304
    %v306 = vadd.f32 %v295, %v305
    %307 = vst [vmem:[#allocation3] sm:$0x1] %v306
    // Predicated region
    $region38: #{tpu_custom_call.1} parent=1 // pred_check
      _
    $region39: #{tpu_custom_call.1} parent=1 // pred_check_branch
      %309 = sbr.rel (0) target = $region41
    $region40: #{tpu_custom_call.1} parent=1 // pred_region
      %s311 = ssub.s32 16, 16
      %312 = vsyncadd [#allocation4], %s311
      %s314 = sshll.u32 [#allocation3], 4
      %s315 = int_to_ptr.vmem [resolvable:$true] %s314
      %317 = dma.vmem_to_hbm [thread:$0]  %s315, 16, %s9, [#allocation4]
    $region41: #{tpu_custom_call.1} parent=1 // pred_fallthru
      _
    // Predicated region
    $region42: #{tpu_custom_call.1} parent=1 // pred_check
      _
    $region43: #{tpu_custom_call.1} parent=1 // pred_check_branch
      %319 = sbr.rel (0) target = $region45
    $region44: #{tpu_custom_call.1} parent=1 // pred_region
      %320 = dma.done [#allocation4], 16
    $region45: #{tpu_custom_call.1} parent=1 // pred_fallthru
      _
    %321 = vsyncpa [#allocation4], 1

</llo_original>
